<compile_context>
chip_gen: v7x
topology: tpu7x:2x2x1
jax: 0.10.0
libtpu: 0.0.40
codegen_flags: <defaults>
</compile_context>

<pallas_src>
import numpy as np
import jax
import jax.numpy as jnp
from jax.experimental import pallas as pl
from jax.experimental.pallas import tpu as pltpu

_LANE = 128
_SUB = 8


def _wiener_kernel(yr_ref, yi_ref, a_ref, b_ref, xr_ref, xi_ref):
    """Elementwise Wiener filter (coefficients precomputed in the wrapper).

    yr/yi: (N, St, 128)  real/imag of FFT(y) tile
    a/b:   (1, St, 128)  A = Re{H}/den, B = Im{H}/den (broadcast over batch)
    """
    yr = yr_ref[...]
    yi = yi_ref[...]
    a = a_ref[...]
    b = b_ref[...]
    xr_ref[...] = a * yr + b * yi        # Re{ conj(H) * Y / den }
    xi_ref[...] = a * yi - b * yr        # Im{ conj(H) * Y / den }


def _chip_config():
    """Returns (double-buffered VMEM budget, min grid steps, vmem_limit_bytes)."""
    vmem_cap = 128 * 1024 * 1024
    try:
        vmem_cap = int(pltpu.get_tpu_info().vmem_capacity_bytes)
    except Exception:
        pass
    kind = ""
    try:
        kind = jax.devices()[0].device_kind.lower()
    except Exception:
        pass
    # v7x: 2 TensorCores, 64 MiB VMEM per TC, ~3.2 TB/s HBM -> bigger steps, >=2/TC.
    is_v7x = ("v7" in kind) or ("7x" in kind) or (vmem_cap <= 96 * 1024 * 1024)
    if is_v7x:
        budget = 20 * 1024 * 1024      # per-step double-buffered footprint target
        min_grid = 4                   # >= 2 grid steps per TensorCore
    else:
        budget = 16 * 1024 * 1024      # v5e/v6e: single TC, ~4-8 MiB steps amortize fine
        min_grid = 2                   # keep prefetch/writeback overlap when R allows
    # Explicit scoped-VMEM limit: covers the budget (+ headroom); needed on v5e
    # (16 MiB default scoped limit) and well under physical VMEM on all chips.
    vmem_limit = min(max(32 * 1024 * 1024, budget + 8 * 1024 * 1024),
                     max(budget + 4 * 1024 * 1024, vmem_cap - 8 * 1024 * 1024))
    return budget, min_grid, int(vmem_limit)


def _choose_rows(R, N, budget_bytes, min_grid):
    """Block sublane-rows St: multiple of 8, VMEM-bound, >= min_grid steps when R allows."""
    # Double-buffered per-row bytes: 2 * (2 inputs + 2 outputs)*N + 2 coeff streams, f32 lanes.
    bytes_per_row = 2 * (4 * N + 2) * _LANE * 4
    cap = max(_SUB, (budget_bytes // bytes_per_row) // _SUB * _SUB)
    if R >= min_grid * _SUB:
        cap = min(cap, max(_SUB, (R // min_grid) // _SUB * _SUB))
    r_up = ((R + _SUB - 1) // _SUB) * _SUB
    return min(cap, r_up)


def _wiener_filter_pallas(Yr, Yi, A, B):
    """Yr/Yi: (N, R, 128) f32.  A/B: (1, R, 128) f32.  Returns (Xr, Xi) same shape as Y."""
    N, R, L = Yr.shape
    budget, min_grid, vmem_limit = _chip_config()
    St = _choose_rows(R, N, budget, min_grid)
    grid = (pl.cdiv(R, St),)             # ragged last block -> masked stores

    y_spec = pl.BlockSpec((N, St, L), lambda j: (0, j, 0))
    c_spec = pl.BlockSpec((1, St, L), lambda j: (0, j, 0))

    cost = pl.CostEstimate(
        flops=6 * N * R * L,
        transcendentals=0,
        bytes_accessed=(4 * N + 2) * R * L * 4,
    )

    return pl.pallas_call(
        _wiener_kernel,
        out_shape=(jax.ShapeDtypeStruct((N, R, L), jnp.float32),
                   jax.ShapeDtypeStruct((N, R, L), jnp.float32)),
        grid_spec=pltpu.PrefetchScalarGridSpec(
            num_scalar_prefetch=0,
            grid=grid,
            in_specs=[y_spec, y_spec, c_spec, c_spec],
            out_specs=[y_spec, y_spec]),
        compiler_params=pltpu.CompilerParams(
            dimension_semantics=("parallel",),
            vmem_limit_bytes=vmem_limit),
        cost_estimate=cost,
    )(Yr, Yi, A, B)


def multi_wiener_deconvolution_3d(y, psfs, Ks):
    """Forward pass of MultiWienerDeconvolution3D.

    y:    (N, H, W, C) float32
    psfs: (H, W, C)    float32   (learnable parameter in the torch module)
    Ks:   (1, 1, C)    float32   (learnable parameter in the torch module)
    returns (N, H, W, C) float32
    """
    # NOTE: the PyTorch forward computes `padding` / `padding_psf` but never applies
    # them; they are intentionally omitted here.
    # TODO(synk): fft2 / ifft2 / ifftshift have no Pallas TPU equivalent; they stay
    # in plain JAX around the Pallas elementwise Wiener-filter kernel.
    Y = jnp.fft.fft2(y.astype(jnp.complex64), axes=(-2, -1))    # torch default dims=(-2,-1)
    Hf = jnp.fft.fft2(psfs.astype(jnp.complex64), axes=(-2, -1))

    N = y.shape[0]
    H_, W_, C_ = psfs.shape
    M = H_ * W_ * C_

    # Batch-independent Wiener coefficients; XLA fuses this into one small
    # elementwise pass over the (H, W, C) frequency plane.
    Hr = jnp.real(Hf).reshape(M)
    Hi = jnp.imag(Hf).reshape(M)
    Kb = jnp.broadcast_to(100.0 * Ks.astype(jnp.float32), psfs.shape).reshape(M)
    inv_den = 1.0 / (Hr * Hr + Hi * Hi + Kb)        # |H|^2 + 100*K  (real, > 0)
    A = Hr * inv_den
    B = Hi * inv_den

    # TODO(synk): this re/im deinterleave (and the lax.complex recombine below)
    # cannot be removed: lax.bitcast_convert_type rejects complex dtypes and
    # Pallas TPU has no complex64 refs.
    Yr = jnp.real(Y).reshape(N, M)
    Yi = jnp.imag(Y).reshape(N, M)

    # Pad only if the flattened frequency plane is not lane-aligned (rare); the
    # big batch arrays are otherwise reshaped for free and the ragged grid tail
    # is handled by masked stores inside pallas_call.
    pad = (-M) % _LANE
    if pad:
        Yr = jnp.pad(Yr, ((0, 0), (0, pad)))
        Yi = jnp.pad(Yi, ((0, 0), (0, pad)))
        A = jnp.pad(A, (0, pad))        # coefficient planes are tiny either way
        B = jnp.pad(B, (0, pad))
    Mp = M + pad
    R = Mp // _LANE
    Yr = Yr.reshape(N, R, _LANE)
    Yi = Yi.reshape(N, R, _LANE)
    A = A.reshape(1, R, _LANE)
    B = B.reshape(1, R, _LANE)

    Xr, Xi = _wiener_filter_pallas(Yr, Yi, A, B)

    Xr = Xr.reshape(N, Mp)
    Xi = Xi.reshape(N, Mp)
    if pad:
        Xr = Xr[:, :M]
        Xi = Xi[:, :M]
    X = jax.lax.complex(Xr.reshape(N, H_, W_, C_), Xi.reshape(N, H_, W_, C_))

    x = jnp.fft.ifft2(X, axes=(-2, -1))
    x = jnp.fft.ifftshift(x, axes=(-2, -1))
    return jnp.real(x)                                           # complex64 -> float32


def _reference(y, psfs, Ks):
    """Pure-JAX transcription of the PyTorch forward, for correctness checking."""
    Y = jnp.fft.fft2(y.astype(jnp.complex64), axes=(-2, -1))
    H_sum = jnp.fft.fft2(psfs.astype(jnp.complex64), axes=(-2, -1))
    X = jnp.conj(H_sum) * Y / (jnp.square(jnp.abs(H_sum)) + 100.0 * Ks)
    x = jnp.fft.ifftshift(jnp.fft.ifft2(X, axes=(-2, -1)), axes=(-2, -1))
    return jnp.real(x)


if __name__ == "__main__":
    key = jax.random.PRNGKey(0)
    k_y, k_psf, k_K = jax.random.split(key, 3)

    N, H, W, C = 2, 16, 16, 4
    y = jax.random.normal(k_y, (N, H, W, C), dtype=jnp.float32)
    # Deterministic synthetic "checkpoint": positive psfs and small positive Ks.
    initial_psfs = jax.random.uniform(k_psf, (H, W, C), dtype=jnp.float32)
    initial_Ks = jnp.abs(jax.random.normal(k_K, (1, 1, C), dtype=jnp.float32)) * 1e-3 + 1e-3

    fwd = jax.jit(multi_wiener_deconvolution_3d)
    out = jax.block_until_ready(fwd(y, initial_psfs, initial_Ks))
    ref = jax.block_until_ready(_reference(y, initial_psfs, initial_Ks))

    assert out.shape == (N, H, W, C) and out.dtype == jnp.float32
    np.testing.assert_allclose(np.asarray(out), np.asarray(ref), rtol=1e-4, atol=1e-4)
    print("KERNEL_OK")
</pallas_src>

<mosaic_0001>
module attributes {stable_mosaic.version = 11 : i64} {
  func.func @_wiener_kernel(%arg0: i32, %arg1: memref<2x8x128xf32, #tpu.memory_space<vmem>>, %arg2: memref<2x8x128xf32, #tpu.memory_space<vmem>>, %arg3: memref<1x8x128xf32, #tpu.memory_space<vmem>>, %arg4: memref<1x8x128xf32, #tpu.memory_space<vmem>>, %arg5: memref<2x8x128xf32, #tpu.memory_space<vmem>>, %arg6: memref<2x8x128xf32, #tpu.memory_space<vmem>>) attributes {dimension_semantics = [#tpu.dimension_semantics<parallel>], iteration_bounds = array<i64: 1>, scalar_prefetch = 0 : i64, scratch_operands = 0 : i64, tpu.core_type = #tpu.core_type<tc>, window_params = [{transform_indices = @transform_0, window_bounds = array<i64: 2, 8, 128>}, {transform_indices = @transform_1, window_bounds = array<i64: 2, 8, 128>}, {transform_indices = @transform_2, window_bounds = array<i64: 1, 8, 128>}, {transform_indices = @transform_3, window_bounds = array<i64: 1, 8, 128>}, {transform_indices = @transform_4, window_bounds = array<i64: 2, 8, 128>}, {transform_indices = @transform_5, window_bounds = array<i64: 2, 8, 128>}]} {
    %c0 = arith.constant 0 : index
    %c0_0 = arith.constant 0 : index
    %c0_1 = arith.constant 0 : index
    %0 = vector.load %arg1[%c0, %c0_0, %c0_1] : memref<2x8x128xf32, #tpu.memory_space<vmem>>, vector<2x8x128xf32>
    %c0_2 = arith.constant 0 : index
    %c0_3 = arith.constant 0 : index
    %c0_4 = arith.constant 0 : index
    %1 = vector.load %arg2[%c0_2, %c0_3, %c0_4] : memref<2x8x128xf32, #tpu.memory_space<vmem>>, vector<2x8x128xf32>
    %c0_5 = arith.constant 0 : index
    %c0_6 = arith.constant 0 : index
    %c0_7 = arith.constant 0 : index
    %2 = vector.load %arg3[%c0_5, %c0_6, %c0_7] : memref<1x8x128xf32, #tpu.memory_space<vmem>>, vector<1x8x128xf32>
    %c0_8 = arith.constant 0 : index
    %c0_9 = arith.constant 0 : index
    %c0_10 = arith.constant 0 : index
    %3 = vector.load %arg4[%c0_8, %c0_9, %c0_10] : memref<1x8x128xf32, #tpu.memory_space<vmem>>, vector<1x8x128xf32>
    %4 = vector.broadcast %2 : vector<1x8x128xf32> to vector<2x8x128xf32>
    %5 = arith.mulf %4, %0 : vector<2x8x128xf32>
    %6 = vector.broadcast %3 : vector<1x8x128xf32> to vector<2x8x128xf32>
    %7 = arith.mulf %6, %1 : vector<2x8x128xf32>
    %8 = arith.addf %5, %7 : vector<2x8x128xf32>
    %c0_11 = arith.constant 0 : index
    %c0_12 = arith.constant 0 : index
    %c0_13 = arith.constant 0 : index
    %9 = vector.load %arg5[%c0_11, %c0_12, %c0_13] : memref<2x8x128xf32, #tpu.memory_space<vmem>>, vector<2x8x128xf32>
    tpu.vector_store %arg5[%c0_11, %c0_12, %c0_13], %8 {strides = array<i32>} : memref<2x8x128xf32, #tpu.memory_space<vmem>>, vector<2x8x128xf32>,
    %10 = vector.broadcast %2 : vector<1x8x128xf32> to vector<2x8x128xf32>
    %11 = arith.mulf %10, %1 : vector<2x8x128xf32>
    %12 = vector.broadcast %3 : vector<1x8x128xf32> to vector<2x8x128xf32>
    %13 = arith.mulf %12, %0 : vector<2x8x128xf32>
    %14 = arith.subf %11, %13 : vector<2x8x128xf32>
    %c0_14 = arith.constant 0 : index
    %c0_15 = arith.constant 0 : index
    %c0_16 = arith.constant 0 : index
    %15 = vector.load %arg6[%c0_14, %c0_15, %c0_16] : memref<2x8x128xf32, #tpu.memory_space<vmem>>, vector<2x8x128xf32>
    tpu.vector_store %arg6[%c0_14, %c0_15, %c0_16], %14 {strides = array<i32>} : memref<2x8x128xf32, #tpu.memory_space<vmem>>, vector<2x8x128xf32>,
    return
  }
  func.func @transform_0(%arg0: i32) -> (i32, i32, i32) {
    %c0_i32 = arith.constant 0 : i32
    %c0_i32_0 = arith.constant 0 : i32
    %c0_i32_1 = arith.constant 0 : i32
    return %c0_i32, %arg0, %c0_i32_0 : i32, i32, i32
  }
  func.func @transform_1(%arg0: i32) -> (i32, i32, i32) {
    %c0_i32 = arith.constant 0 : i32
    %c0_i32_0 = arith.constant 0 : i32
    %c0_i32_1 = arith.constant 0 : i32
    return %c0_i32, %arg0, %c0_i32_0 : i32, i32, i32
  }
  func.func @transform_2(%arg0: i32) -> (i32, i32, i32) {
    %c0_i32 = arith.constant 0 : i32
    %c0_i32_0 = arith.constant 0 : i32
    %c0_i32_1 = arith.constant 0 : i32
    return %c0_i32, %arg0, %c0_i32_0 : i32, i32, i32
  }
  func.func @transform_3(%arg0: i32) -> (i32, i32, i32) {
    %c0_i32 = arith.constant 0 : i32
    %c0_i32_0 = arith.constant 0 : i32
    %c0_i32_1 = arith.constant 0 : i32
    return %c0_i32, %arg0, %c0_i32_0 : i32, i32, i32
  }
  func.func @transform_4(%arg0: i32) -> (i32, i32, i32) {
    %c0_i32 = arith.constant 0 : i32
    %c0_i32_0 = arith.constant 0 : i32
    %c0_i32_1 = arith.constant 0 : i32
    return %c0_i32, %arg0, %c0_i32_0 : i32, i32, i32
  }
  func.func @transform_5(%arg0: i32) -> (i32, i32, i32) {
    %c0_i32 = arith.constant 0 : i32
    %c0_i32_0 = arith.constant 0 : i32
    %c0_i32_1 = arith.constant 0 : i32
    return %c0_i32, %arg0, %c0_i32_0 : i32, i32, i32
  }
}

</mosaic_0001>

<llo_original>
// kernel: multi_wiener_deconvolution_3d.1
$region0: #{multi_wiener_deconvolution_3d.1}
  #allocation0 [shape = 'u32[]', space=smem, size = 0x4, offset = 0x4, fixed_abs, tag = 'smem constant byte address 0x4 - core index']
  #allocation1 [shape = 'u32[144,128]{1,0:T(1,128)}', space=vmem, size = 0x12000, scoped, tag = 'internal scratch']
  %s0 = inlined_call_operand.vmem [shape: f32[2,8,128], index: 0, kind: input, shape index: {}]
  %s1 = inlined_call_operand.vmem [shape: f32[2,8,128], index: 1, kind: input, shape index: {}]
  %s2 = inlined_call_operand.vmem [shape: f32[1,8,128], index: 2, kind: input, shape index: {}]
  %s3 = inlined_call_operand.vmem [shape: f32[1,8,128], index: 3, kind: input, shape index: {}]
  %s4 = inlined_call_operand.vmem [shape: f32[2,8,128], index: 4, kind: output, shape index: {0}]
  %s5 = inlined_call_operand.vmem [shape: f32[2,8,128], index: 5, kind: output, shape index: {1}]
  %6 = xla_tuple %s4, %s5
  %s7 = sld [smem:[#allocation0]]
  $region34: #{multi_wiener_deconvolution_3d.1} parent=0
    _
  %s9 = ssub.s32 1, %s7
  %s10 = scalar_select 0, %s9, %s7
  // Predicated region
  $region2: #{multi_wiener_deconvolution_3d.1} parent=0 // pred_check
    _
  $region3: #{multi_wiener_deconvolution_3d.1} parent=0 // pred_check_branch
    %12 = sbr.rel (0) target = $region5
  $region4: #{multi_wiener_deconvolution_3d.1} parent=0 // pred_region
    _
  $region5: #{multi_wiener_deconvolution_3d.1} parent=0 // pred_fallthru
    _
  // Predicated region
  $region6: #{multi_wiener_deconvolution_3d.1} parent=0 // pred_check
    _
  $region7: #{multi_wiener_deconvolution_3d.1} parent=0 // pred_check_branch
    %14 = sbr.rel (0) target = $region9
  $region8: #{multi_wiener_deconvolution_3d.1} parent=0 // pred_region
    _
  $region9: #{multi_wiener_deconvolution_3d.1} parent=0 // pred_fallthru
    _
  // Predicated region
  $region10: #{multi_wiener_deconvolution_3d.1} parent=0 // pred_check
    _
  $region11: #{multi_wiener_deconvolution_3d.1} parent=0 // pred_check_branch
    %16 = sbr.rel (0) target = $region13
  $region12: #{multi_wiener_deconvolution_3d.1} parent=0 // pred_region
    _
  $region13: #{multi_wiener_deconvolution_3d.1} parent=0 // pred_fallthru
    _
  // Predicated region
  $region14: #{multi_wiener_deconvolution_3d.1} parent=0 // pred_check
    _
  $region15: #{multi_wiener_deconvolution_3d.1} parent=0 // pred_check_branch
    %18 = sbr.rel (0) target = $region17
  $region16: #{multi_wiener_deconvolution_3d.1} parent=0 // pred_region
    _
  $region17: #{multi_wiener_deconvolution_3d.1} parent=0 // pred_fallthru
    _
  %v19 = vld [vmem:[%s0] sm:$0xff]
  %v20 = vld [vmem:[%s0 + $0x8] sm:$0xff]
  %v21 = vld [vmem:[%s1] sm:$0xff]
  %v22 = vld [vmem:[%s1 + $0x8] sm:$0xff]
  %v23 = vld [vmem:[%s2] sm:$0xff]
  %v24 = vld [vmem:[%s3] sm:$0xff]
  %v25 = vmul.f32 %v23, %v19
  %v26 = vmul.f32 %v23, %v20
  %v27 = vmul.f32 %v24, %v21
  %v28 = vmul.f32 %v24, %v22
  %v29 = vadd.f32 %v25, %v27
  %v30 = vadd.f32 %v26, %v28
  %31 = vst [vmem:[%s4] sm:$0xff] %v29
  %32 = vst [vmem:[%s4 + $0x8] sm:$0xff] %v30
  %v33 = vmul.f32 %v23, %v21
  %v34 = vmul.f32 %v23, %v22
  %v35 = vmul.f32 %v24, %v19
  %v36 = vmul.f32 %v24, %v20
  %v37 = vsub.f32 %v33, %v35
  %v38 = vsub.f32 %v34, %v36
  %39 = vst [vmem:[%s5] sm:$0xff] %v37
  %40 = vst [vmem:[%s5 + $0x8] sm:$0xff] %v38
  // Predicated region
  $region18: #{multi_wiener_deconvolution_3d.1} parent=0 // pred_check
    _
  $region19: #{multi_wiener_deconvolution_3d.1} parent=0 // pred_check_branch
    %42 = sbr.rel (0) target = $region21
  $region20: #{multi_wiener_deconvolution_3d.1} parent=0 // pred_region
    _
  $region21: #{multi_wiener_deconvolution_3d.1} parent=0 // pred_fallthru
    _
  // Predicated region
  $region22: #{multi_wiener_deconvolution_3d.1} parent=0 // pred_check
    _
  $region23: #{multi_wiener_deconvolution_3d.1} parent=0 // pred_check_branch
    %44 = sbr.rel (0) target = $region25
  $region24: #{multi_wiener_deconvolution_3d.1} parent=0 // pred_region
    _
  $region25: #{multi_wiener_deconvolution_3d.1} parent=0 // pred_fallthru
    _
  // Predicated region
  $region26: #{multi_wiener_deconvolution_3d.1} parent=0 // pred_check
    _
  $region27: #{multi_wiener_deconvolution_3d.1} parent=0 // pred_check_branch
    %46 = sbr.rel (0) target = $region29
  $region28: #{multi_wiener_deconvolution_3d.1} parent=0 // pred_region
    _
  $region29: #{multi_wiener_deconvolution_3d.1} parent=0 // pred_fallthru
    _
  // Predicated region
  $region30: #{multi_wiener_deconvolution_3d.1} parent=0 // pred_check
    _
  $region31: #{multi_wiener_deconvolution_3d.1} parent=0 // pred_check_branch
    %48 = sbr.rel (0) target = $region33
  $region32: #{multi_wiener_deconvolution_3d.1} parent=0 // pred_region
    _
  $region33: #{multi_wiener_deconvolution_3d.1} parent=0 // pred_fallthru
    _

</llo_original>
